<compile_context>
chip_gen: v6e
topology: v6e:2x2x1
jax: 0.10.0
libtpu: 0.0.40
codegen_flags: <defaults>
</compile_context>

<pallas_src>
import functools

import jax
import jax.numpy as jnp
from jax.experimental import pallas as pl
from jax.experimental.pallas import tpu as pltpu


def _ig_kernel(H, ragged,
               gray_ref, gray_up_ref, gray_dn_ref,
               pred_ref, pred_up_ref, pred_dn_ref,
               num_ref, den_ref,
               pad_g_ref, pad_p_ref):
    """One (batch-group, row-strip) step of the image-gradient loss."""
    j = pl.program_id(1)                       # row-strip index (sequential)
    BT, tH, W = gray_ref.shape
    hb = gray_up_ref.shape[1]
    row0 = j * tH                              # first global row of this strip

    @pl.when(j == 0)
    def _init():
        num_ref[...] = jnp.zeros_like(num_ref)
        den_ref[...] = jnp.zeros_like(den_ref)

    if ragged:
        # Rows past the true image height (last, partial strip) hold garbage:
        # zero them before use and drop them from the reductions.
        row_ids = jax.lax.broadcasted_iota(jnp.int32, (tH, 1), 0)
        row_valid = (row_ids + row0) < H       # (tH, 1); broadcasts over lanes
    else:
        row_valid = None

    def sobel_xy(strip_ref, up_ref, dn_ref, pad_ref):
        """Separable 3x3 Sobel pair on one zero-padded strip."""
        img = strip_ref[...]
        if ragged:
            img = jnp.where(row_valid, img, 0.0)

        # Halo rows; outside the image they are the conv's zero padding.
        up_row = jnp.where(j > 0,
                           up_ref[:, hb - 1:hb, :],
                           jnp.zeros((BT, 1, W), jnp.float32))
        dn_row = jnp.where(row0 + tH < H,
                           dn_ref[:, 0:1, :],
                           jnp.zeros((BT, 1, W), jnp.float32))

        # Assemble the (tH+2, W+2) zero-padded strip in VMEM (no HBM pad pass).
        zcol = jnp.zeros((BT, tH + 2, 1), jnp.float32)
        pad_ref[:, :, 0:1] = zcol
        pad_ref[:, :, W + 1:W + 2] = zcol
        pad_ref[:, 0:1, 1:W + 1] = up_row
        pad_ref[:, tH + 1:tH + 2, 1:W + 1] = dn_row
        pad_ref[:, 1:tH + 1, 1:W + 1] = img

        # Separable Sobel: shared horizontal prefilters, then vertical combine.
        p0 = pad_ref[:, :, 0:W]
        p1 = pad_ref[:, :, 1:W + 1]
        p2 = pad_ref[:, :, 2:W + 2]
        d = p0 - p2                        # horizontal [1, 0, -1]
        s = (p0 + p2) + (p1 + p1)          # horizontal [1, 2, 1]
        d1 = d[:, 1:tH + 1, :]
        jx = d[:, 0:tH, :] + (d1 + d1) + d[:, 2:tH + 2, :]   # vertical [1, 2, 1]
        jy = s[:, 0:tH, :] - s[:, 2:tH + 2, :]               # vertical [1, 0, -1]
        return jx, jy

    i_x, i_y = sobel_xy(gray_ref, gray_up_ref, gray_dn_ref, pad_g_ref)
    g_x, g_y = sobel_xy(pred_ref, pred_up_ref, pred_dn_ref, pad_p_ref)

    g = jnp.sqrt(g_x * g_x + g_y * g_y + 1e-06)
    dot = i_x * g_x + i_y * g_y
    gradient = 1.0 - dot * dot
    num_t = g * gradient
    den_t = g
    if ragged:
        num_t = jnp.where(row_valid, num_t, 0.0)
        den_t = jnp.where(row_valid, den_t, 0.0)

    # Per-step reductions are VALU-dominated (vreg tree-add + O(1) XLU reduce);
    # accumulate into the (1,1) per-batch-group output blocks.
    num_ref[...] += jnp.sum(num_t).reshape(1, 1)
    den_ref[...] += jnp.sum(den_t).reshape(1, 1)


def _choose_tiling(N, H, W):
    """Pick (batch_per_step, strip_rows) targeting ~0.5 MiB f32 per input block."""
    target_elems = 128 * 1024
    hw = H * W
    if hw <= target_elems:
        bt = max(1, min(N, target_elems // max(hw, 1)))
        while N % bt:                       # keep batch groups exact (no masking)
            bt -= 1
        return bt, H                        # whole image per step, bt images
    th = (target_elems // W) // 8 * 8       # strip rows, multiple of 8
    th = max(8, min(th, H))
    if th >= H:
        return 1, H
    return 1, th


def image_gradient_loss(gray_image, pred, reduction='mean', loss_weight=1.0,
                        tile=None):
    """Matches ImageGradientLoss.forward. gray_image, pred: (N, H, W)."""
    gray_image = gray_image.astype(jnp.float32)
    pred = pred.astype(jnp.float32)
    N, H, W = gray_image.shape

    BT, tH = _choose_tiling(N, H, W) if tile is None else tile
    G = N // BT                              # batch groups
    S = pl.cdiv(H, tH)                       # row strips
    hb = 8 if H >= 8 else H                  # halo slab height
    rb = tH // 8                             # strip height in 8-row blocks
    n_hb = pl.cdiv(H, hb)
    ragged = (H % tH) != 0

    strip_spec = pl.BlockSpec((BT, tH, W), lambda b, j: (b, j, 0))
    up_spec = pl.BlockSpec(
        (BT, hb, W), lambda b, j: (b, jnp.maximum(j * rb - 1, 0), 0))
    dn_spec = pl.BlockSpec(
        (BT, hb, W), lambda b, j: (b, jnp.minimum((j + 1) * rb, n_hb - 1), 0))
    acc_spec = pl.BlockSpec((1, 1), lambda b, j: (b, 0))

    kernel = functools.partial(_ig_kernel, H, ragged)

    num, den = pl.pallas_call(
        kernel,
        out_shape=(jax.ShapeDtypeStruct((G, 1), jnp.float32),
                   jax.ShapeDtypeStruct((G, 1), jnp.float32)),
        grid_spec=pltpu.PrefetchScalarGridSpec(
            num_scalar_prefetch=0,
            grid=(G, S),
            in_specs=[strip_spec, up_spec, dn_spec,
                      strip_spec, up_spec, dn_spec],
            out_specs=[acc_spec, acc_spec],
            scratch_shapes=[pltpu.VMEM((BT, tH + 2, W + 2), jnp.float32),
                            pltpu.VMEM((BT, tH + 2, W + 2), jnp.float32)]),
        compiler_params=pltpu.CompilerParams(
            dimension_semantics=("parallel", "arbitrary"),
            vmem_limit_bytes=48 * 1024 * 1024),
    )(gray_image, gray_image, gray_image, pred, pred, pred)

    loss = jnp.sum(num) / jnp.sum(den)
    loss = jnp.maximum(loss, 0.0)            # torch.clamp_min(., 0)
    # reduction 'mean'/'sum' on a 0-d scalar is a no-op (matches PyTorch here).
    return loss * loss_weight


def _reference_loss(gray_image, pred, loss_weight=1.0):
    """Pure-JAX reference (mirrors the PyTorch forward) for verification."""
    gray_image = gray_image.astype(jnp.float32)
    pred = pred.astype(jnp.float32)
    wx = jnp.array([[1.0, 0.0, -1.0], [2.0, 0.0, -2.0], [1.0, 0.0, -1.0]],
                   jnp.float32)
    wy = jnp.array([[1.0, 2.0, 1.0], [0.0, 0.0, 0.0], [-1.0, -2.0, -1.0]],
                   jnp.float32)

    def conv(img, w):
        x = img[:, None, :, :]
        k = w[None, None, :, :]
        return jax.lax.conv_general_dilated(
            x, k, window_strides=(1, 1), padding=((1, 1), (1, 1)),
            dimension_numbers=('NCHW', 'OIHW', 'NCHW'))[:, 0]

    I_x, I_y = conv(gray_image, wx), conv(gray_image, wy)
    G_x, G_y = conv(pred, wx), conv(pred, wy)
    G = jnp.sqrt(G_x ** 2 + G_y ** 2 + 1e-06)
    gradient = 1.0 - (I_x * G_x + I_y * G_y) ** 2
    loss = jnp.sum(G * gradient) / jnp.sum(G)
    return jnp.maximum(loss, 0.0) * loss_weight


if __name__ == "__main__":
    key = jax.random.PRNGKey(0)
    k1, k2, k3, k4 = jax.random.split(key, 4)

    # Test 1: small batched images (single strip, BT=2 per grid step).
    N, H, W = 2, 16, 16
    gray = jax.random.uniform(k1, (N, H, W), dtype=jnp.float32)
    pred = jax.nn.sigmoid(jax.random.normal(k2, (N, H, W), jnp.float32))
    out = jax.block_until_ready(image_gradient_loss(gray, pred))
    ref = jax.block_until_ready(_reference_loss(gray, pred))
    assert jnp.allclose(out, ref, rtol=1e-5, atol=1e-5), (out, ref)

    # Test 2: force multi-strip tiling (halo rows + ragged last strip path).
    N2, H2, W2 = 1, 40, 24
    gray2 = jax.random.uniform(k3, (N2, H2, W2), dtype=jnp.float32)
    pred2 = jax.nn.sigmoid(jax.random.normal(k4, (N2, H2, W2), jnp.float32))
    out2 = jax.block_until_ready(image_gradient_loss(gray2, pred2, tile=(1, 16)))
    ref2 = jax.block_until_ready(_reference_loss(gray2, pred2))
    assert jnp.allclose(out2, ref2, rtol=1e-5, atol=1e-5), (out2, ref2)

    print("KERNEL_OK")
</pallas_src>

<mosaic_0001>
module attributes {stable_mosaic.version = 11 : i64} {
  func.func @_ig_kernel(%arg0: i32, %arg1: i32, %arg2: memref<2x16x16xf32, #tpu.memory_space<vmem>>, %arg3: memref<2x8x16xf32, #tpu.memory_space<vmem>>, %arg4: memref<2x8x16xf32, #tpu.memory_space<vmem>>, %arg5: memref<2x16x16xf32, #tpu.memory_space<vmem>>, %arg6: memref<2x8x16xf32, #tpu.memory_space<vmem>>, %arg7: memref<2x8x16xf32, #tpu.memory_space<vmem>>, %arg8: memref<1x1xf32, #tpu.memory_space<vmem>>, %arg9: memref<1x1xf32, #tpu.memory_space<vmem>>, %arg10: memref<2x18x18xf32, #tpu.memory_space<vmem>>, %arg11: memref<2x18x18xf32, #tpu.memory_space<vmem>>) attributes {dimension_semantics = [#tpu.dimension_semantics<parallel>, #tpu.dimension_semantics<arbitrary>], iteration_bounds = array<i64: 1, 1>, scalar_prefetch = 0 : i64, scratch_operands = 2 : i64, tpu.core_type = #tpu.core_type<tc>, window_params = [{transform_indices = @transform_0, window_bounds = array<i64: 2, 16, 16>}, {transform_indices = @transform_1, window_bounds = array<i64: 2, 8, 16>}, {transform_indices = @transform_2, window_bounds = array<i64: 2, 8, 16>}, {transform_indices = @transform_3, window_bounds = array<i64: 2, 16, 16>}, {transform_indices = @transform_4, window_bounds = array<i64: 2, 8, 16>}, {transform_indices = @transform_5, window_bounds = array<i64: 2, 8, 16>}, {transform_indices = @transform_6, window_bounds = array<i64: 1, 1>}, {transform_indices = @transform_7, window_bounds = array<i64: 1, 1>}]} {
    %c16_i32 = arith.constant 16 : i32
    %0 = arith.muli %arg1, %c16_i32 : i32
    %c0_i32 = arith.constant 0 : i32
    %1 = arith.cmpi eq, %arg1, %c0_i32 : i32
    %2 = arith.extui %1 : i1 to i32
    %c0_i32_0 = arith.constant 0 : i32
    %3 = arith.cmpi ne, %2, %c0_i32_0 : i32
    scf.if %3 {
      %cst_85 = arith.constant 0.000000e+00 : f32
      %97 = vector.broadcast %cst_85 : f32 to vector<1x1xf32>
      %c0_86 = arith.constant 0 : index
      %c0_87 = arith.constant 0 : index
      %98 = vector.load %arg8[%c0_86, %c0_87] : memref<1x1xf32, #tpu.memory_space<vmem>>, vector<1x1xf32>
      tpu.vector_store %arg8[%c0_86, %c0_87], %97 {strides = array<i32>} : memref<1x1xf32, #tpu.memory_space<vmem>>, vector<1x1xf32>,
      %cst_88 = arith.constant 0.000000e+00 : f32
      %99 = vector.broadcast %cst_88 : f32 to vector<1x1xf32>
      %c0_89 = arith.constant 0 : index
      %c0_90 = arith.constant 0 : index
      %100 = vector.load %arg9[%c0_89, %c0_90] : memref<1x1xf32, #tpu.memory_space<vmem>>, vector<1x1xf32>
      tpu.vector_store %arg9[%c0_89, %c0_90], %99 {strides = array<i32>} : memref<1x1xf32, #tpu.memory_space<vmem>>, vector<1x1xf32>,
    } else {
    }
    %c0 = arith.constant 0 : index
    %c0_1 = arith.constant 0 : index
    %c0_2 = arith.constant 0 : index
    %4 = vector.load %arg2[%c0, %c0_1, %c0_2] : memref<2x16x16xf32, #tpu.memory_space<vmem>>, vector<2x16x16xf32>
    %c0_i32_3 = arith.constant 0 : i32
    %5 = arith.cmpi sgt, %arg1, %c0_i32_3 : i32
    %c0_4 = arith.constant 0 : index
    %c7 = arith.constant 7 : index
    %c0_5 = arith.constant 0 : index
    %6 = vector.load %arg3[%c0_4, %c7, %c0_5] : memref<2x8x16xf32, #tpu.memory_space<vmem>>, vector<2x1x16xf32>
    %cst = arith.constant 0.000000e+00 : f32
    %7 = vector.broadcast %cst : f32 to vector<2x1x16xf32>
    %8 = arith.select %5, %6, %7 : vector<2x1x16xf32>
    %c16_i32_6 = arith.constant 16 : i32
    %9 = arith.addi %0, %c16_i32_6 : i32
    %c16_i32_7 = arith.constant 16 : i32
    %10 = arith.cmpi slt, %9, %c16_i32_7 : i32
    %c0_8 = arith.constant 0 : index
    %c0_9 = arith.constant 0 : index
    %c0_10 = arith.constant 0 : index
    %11 = vector.load %arg4[%c0_8, %c0_9, %c0_10] : memref<2x8x16xf32, #tpu.memory_space<vmem>>, vector<2x1x16xf32>
    %cst_11 = arith.constant 0.000000e+00 : f32
    %12 = vector.broadcast %cst_11 : f32 to vector<2x1x16xf32>
    %13 = arith.select %10, %11, %12 : vector<2x1x16xf32>
    %cst_12 = arith.constant 0.000000e+00 : f32
    %14 = vector.broadcast %cst_12 : f32 to vector<2x18x1xf32>
    %c0_13 = arith.constant 0 : index
    %c0_14 = arith.constant 0 : index
    %c0_15 = arith.constant 0 : index
    %15 = vector.load %arg10[%c0_13, %c0_14, %c0_15] : memref<2x18x18xf32, #tpu.memory_space<vmem>>, vector<2x18x1xf32>
    tpu.vector_store %arg10[%c0_13, %c0_14, %c0_15], %14 {strides = array<i32>} : memref<2x18x18xf32, #tpu.memory_space<vmem>>, vector<2x18x1xf32>,
    %c0_16 = arith.constant 0 : index
    %c0_17 = arith.constant 0 : index
    %c17 = arith.constant 17 : index
    %16 = vector.load %arg10[%c0_16, %c0_17, %c17] : memref<2x18x18xf32, #tpu.memory_space<vmem>>, vector<2x18x1xf32>
    tpu.vector_store %arg10[%c0_16, %c0_17, %c17], %14 {strides = array<i32>} : memref<2x18x18xf32, #tpu.memory_space<vmem>>, vector<2x18x1xf32>,
    %c0_18 = arith.constant 0 : index
    %c0_19 = arith.constant 0 : index
    %c1 = arith.constant 1 : index
    %17 = vector.load %arg10[%c0_18, %c0_19, %c1] : memref<2x18x18xf32, #tpu.memory_space<vmem>>, vector<2x1x16xf32>
    tpu.vector_store %arg10[%c0_18, %c0_19, %c1], %8 {strides = array<i32>} : memref<2x18x18xf32, #tpu.memory_space<vmem>>, vector<2x1x16xf32>,
    %c0_20 = arith.constant 0 : index
    %c17_21 = arith.constant 17 : index
    %c1_22 = arith.constant 1 : index
    %18 = vector.load %arg10[%c0_20, %c17_21, %c1_22] : memref<2x18x18xf32, #tpu.memory_space<vmem>>, vector<2x1x16xf32>
    tpu.vector_store %arg10[%c0_20, %c17_21, %c1_22], %13 {strides = array<i32>} : memref<2x18x18xf32, #tpu.memory_space<vmem>>, vector<2x1x16xf32>,
    %c0_23 = arith.constant 0 : index
    %c1_24 = arith.constant 1 : index
    %c1_25 = arith.constant 1 : index
    %19 = vector.load %arg10[%c0_23, %c1_24, %c1_25] : memref<2x18x18xf32, #tpu.memory_space<vmem>>, vector<2x16x16xf32>
    tpu.vector_store %arg10[%c0_23, %c1_24, %c1_25], %4 {strides = array<i32>} : memref<2x18x18xf32, #tpu.memory_space<vmem>>, vector<2x16x16xf32>,
    %c0_26 = arith.constant 0 : index
    %c0_27 = arith.constant 0 : index
    %c0_28 = arith.constant 0 : index
    %20 = vector.load %arg10[%c0_26, %c0_27, %c0_28] : memref<2x18x18xf32, #tpu.memory_space<vmem>>, vector<2x18x16xf32>
    %c0_29 = arith.constant 0 : index
    %c0_30 = arith.constant 0 : index
    %c1_31 = arith.constant 1 : index
    %21 = vector.load %arg10[%c0_29, %c0_30, %c1_31] : memref<2x18x18xf32, #tpu.memory_space<vmem>>, vector<2x18x16xf32>
    %c0_32 = arith.constant 0 : index
    %c0_33 = arith.constant 0 : index
    %c2 = arith.constant 2 : index
    %22 = vector.load %arg10[%c0_32, %c0_33, %c2] : memref<2x18x18xf32, #tpu.memory_space<vmem>>, vector<2x18x16xf32>
    %23 = arith.subf %20, %22 : vector<2x18x16xf32>
    %24 = arith.addf %20, %22 : vector<2x18x16xf32>
    %25 = arith.addf %21, %21 : vector<2x18x16xf32>
    %26 = arith.addf %24, %25 : vector<2x18x16xf32>
    %27 = vector.extract_strided_slice %23 {offsets = [0, 1, 0], sizes = [2, 16, 16], strides = [1, 1, 1]} : vector<2x18x16xf32> to vector<2x16x16xf32>
    %28 = vector.extract_strided_slice %23 {offsets = [0, 0, 0], sizes = [2, 16, 16], strides = [1, 1, 1]} : vector<2x18x16xf32> to vector<2x16x16xf32>
    %29 = arith.addf %27, %27 : vector<2x16x16xf32>
    %30 = arith.addf %28, %29 : vector<2x16x16xf32>
    %31 = vector.extract_strided_slice %23 {offsets = [0, 2, 0], sizes = [2, 16, 16], strides = [1, 1, 1]} : vector<2x18x16xf32> to vector<2x16x16xf32>
    %32 = arith.addf %30, %31 : vector<2x16x16xf32>
    %33 = vector.extract_strided_slice %26 {offsets = [0, 0, 0], sizes = [2, 16, 16], strides = [1, 1, 1]} : vector<2x18x16xf32> to vector<2x16x16xf32>
    %34 = vector.extract_strided_slice %26 {offsets = [0, 2, 0], sizes = [2, 16, 16], strides = [1, 1, 1]} : vector<2x18x16xf32> to vector<2x16x16xf32>
    %35 = arith.subf %33, %34 : vector<2x16x16xf32>
    %c0_34 = arith.constant 0 : index
    %c0_35 = arith.constant 0 : index
    %c0_36 = arith.constant 0 : index
    %36 = vector.load %arg5[%c0_34, %c0_35, %c0_36] : memref<2x16x16xf32, #tpu.memory_space<vmem>>, vector<2x16x16xf32>
    %c0_i32_37 = arith.constant 0 : i32
    %37 = arith.cmpi sgt, %arg1, %c0_i32_37 : i32
    %c0_38 = arith.constant 0 : index
    %c7_39 = arith.constant 7 : index
    %c0_40 = arith.constant 0 : index
    %38 = vector.load %arg6[%c0_38, %c7_39, %c0_40] : memref<2x8x16xf32, #tpu.memory_space<vmem>>, vector<2x1x16xf32>
    %cst_41 = arith.constant 0.000000e+00 : f32
    %39 = vector.broadcast %cst_41 : f32 to vector<2x1x16xf32>
    %40 = arith.select %37, %38, %39 : vector<2x1x16xf32>
    %c16_i32_42 = arith.constant 16 : i32
    %41 = arith.addi %0, %c16_i32_42 : i32
    %c16_i32_43 = arith.constant 16 : i32
    %42 = arith.cmpi slt, %41, %c16_i32_43 : i32
    %c0_44 = arith.constant 0 : index
    %c0_45 = arith.constant 0 : index
    %c0_46 = arith.constant 0 : index
    %43 = vector.load %arg7[%c0_44, %c0_45, %c0_46] : memref<2x8x16xf32, #tpu.memory_space<vmem>>, vector<2x1x16xf32>
    %cst_47 = arith.constant 0.000000e+00 : f32
    %44 = vector.broadcast %cst_47 : f32 to vector<2x1x16xf32>
    %45 = arith.select %42, %43, %44 : vector<2x1x16xf32>
    %cst_48 = arith.constant 0.000000e+00 : f32
    %46 = vector.broadcast %cst_48 : f32 to vector<2x18x1xf32>
    %c0_49 = arith.constant 0 : index
    %c0_50 = arith.constant 0 : index
    %c0_51 = arith.constant 0 : index
    %47 = vector.load %arg11[%c0_49, %c0_50, %c0_51] : memref<2x18x18xf32, #tpu.memory_space<vmem>>, vector<2x18x1xf32>
    tpu.vector_store %arg11[%c0_49, %c0_50, %c0_51], %46 {strides = array<i32>} : memref<2x18x18xf32, #tpu.memory_space<vmem>>, vector<2x18x1xf32>,
    %c0_52 = arith.constant 0 : index
    %c0_53 = arith.constant 0 : index
    %c17_54 = arith.constant 17 : index
    %48 = vector.load %arg11[%c0_52, %c0_53, %c17_54] : memref<2x18x18xf32, #tpu.memory_space<vmem>>, vector<2x18x1xf32>
    tpu.vector_store %arg11[%c0_52, %c0_53, %c17_54], %46 {strides = array<i32>} : memref<2x18x18xf32, #tpu.memory_space<vmem>>, vector<2x18x1xf32>,
    %c0_55 = arith.constant 0 : index
    %c0_56 = arith.constant 0 : index
    %c1_57 = arith.constant 1 : index
    %49 = vector.load %arg11[%c0_55, %c0_56, %c1_57] : memref<2x18x18xf32, #tpu.memory_space<vmem>>, vector<2x1x16xf32>
    tpu.vector_store %arg11[%c0_55, %c0_56, %c1_57], %40 {strides = array<i32>} : memref<2x18x18xf32, #tpu.memory_space<vmem>>, vector<2x1x16xf32>,
    %c0_58 = arith.constant 0 : index
    %c17_59 = arith.constant 17 : index
    %c1_60 = arith.constant 1 : index
    %50 = vector.load %arg11[%c0_58, %c17_59, %c1_60] : memref<2x18x18xf32, #tpu.memory_space<vmem>>, vector<2x1x16xf32>
    tpu.vector_store %arg11[%c0_58, %c17_59, %c1_60], %45 {strides = array<i32>} : memref<2x18x18xf32, #tpu.memory_space<vmem>>, vector<2x1x16xf32>,
    %c0_61 = arith.constant 0 : index
    %c1_62 = arith.constant 1 : index
    %c1_63 = arith.constant 1 : index
    %51 = vector.load %arg11[%c0_61, %c1_62, %c1_63] : memref<2x18x18xf32, #tpu.memory_space<vmem>>, vector<2x16x16xf32>
    tpu.vector_store %arg11[%c0_61, %c1_62, %c1_63], %36 {strides = array<i32>} : memref<2x18x18xf32, #tpu.memory_space<vmem>>, vector<2x16x16xf32>,
    %c0_64 = arith.constant 0 : index
    %c0_65 = arith.constant 0 : index
    %c0_66 = arith.constant 0 : index
    %52 = vector.load %arg11[%c0_64, %c0_65, %c0_66] : memref<2x18x18xf32, #tpu.memory_space<vmem>>, vector<2x18x16xf32>
    %c0_67 = arith.constant 0 : index
    %c0_68 = arith.constant 0 : index
    %c1_69 = arith.constant 1 : index
    %53 = vector.load %arg11[%c0_67, %c0_68, %c1_69] : memref<2x18x18xf32, #tpu.memory_space<vmem>>, vector<2x18x16xf32>
    %c0_70 = arith.constant 0 : index
    %c0_71 = arith.constant 0 : index
    %c2_72 = arith.constant 2 : index
    %54 = vector.load %arg11[%c0_70, %c0_71, %c2_72] : memref<2x18x18xf32, #tpu.memory_space<vmem>>, vector<2x18x16xf32>
    %55 = arith.subf %52, %54 : vector<2x18x16xf32>
    %56 = arith.addf %52, %54 : vector<2x18x16xf32>
    %57 = arith.addf %53, %53 : vector<2x18x16xf32>
    %58 = arith.addf %56, %57 : vector<2x18x16xf32>
    %59 = vector.extract_strided_slice %55 {offsets = [0, 1, 0], sizes = [2, 16, 16], strides = [1, 1, 1]} : vector<2x18x16xf32> to vector<2x16x16xf32>
    %60 = vector.extract_strided_slice %55 {offsets = [0, 0, 0], sizes = [2, 16, 16], strides = [1, 1, 1]} : vector<2x18x16xf32> to vector<2x16x16xf32>
    %61 = arith.addf %59, %59 : vector<2x16x16xf32>
    %62 = arith.addf %60, %61 : vector<2x16x16xf32>
    %63 = vector.extract_strided_slice %55 {offsets = [0, 2, 0], sizes = [2, 16, 16], strides = [1, 1, 1]} : vector<2x18x16xf32> to vector<2x16x16xf32>
    %64 = arith.addf %62, %63 : vector<2x16x16xf32>
    %65 = vector.extract_strided_slice %58 {offsets = [0, 0, 0], sizes = [2, 16, 16], strides = [1, 1, 1]} : vector<2x18x16xf32> to vector<2x16x16xf32>
    %66 = vector.extract_strided_slice %58 {offsets = [0, 2, 0], sizes = [2, 16, 16], strides = [1, 1, 1]} : vector<2x18x16xf32> to vector<2x16x16xf32>
    %67 = arith.subf %65, %66 : vector<2x16x16xf32>
    %68 = arith.mulf %64, %64 : vector<2x16x16xf32>
    %69 = arith.mulf %67, %67 : vector<2x16x16xf32>
    %70 = arith.addf %68, %69 : vector<2x16x16xf32>
    %cst_73 = arith.constant 9.99999997E-7 : f32
    %71 = vector.broadcast %cst_73 : f32 to vector<2x16x16xf32>
    %72 = arith.addf %70, %71 : vector<2x16x16xf32>
    %73 = math.sqrt %72 : vector<2x16x16xf32>
    %74 = arith.mulf %32, %64 : vector<2x16x16xf32>
    %75 = arith.mulf %35, %67 : vector<2x16x16xf32>
    %76 = arith.addf %74, %75 : vector<2x16x16xf32>
    %77 = arith.mulf %76, %76 : vector<2x16x16xf32>
    %cst_74 = arith.constant 1.000000e+00 : f32
    %78 = vector.broadcast %cst_74 : f32 to vector<2x16x16xf32>
    %79 = arith.subf %78, %77 : vector<2x16x16xf32>
    %80 = arith.mulf %73, %79 : vector<2x16x16xf32>
    %c0_75 = arith.constant 0 : index
    %c0_76 = arith.constant 0 : index
    %81 = vector.load %arg8[%c0_75, %c0_76] : memref<1x1xf32, #tpu.memory_space<vmem>>, vector<1x1xf32>
    %82 = vector.shape_cast %80 : vector<2x16x16xf32> to vector<1x2x16x16xf32>
    %cst_77 = arith.constant dense<0.000000e+00> : vector<1xf32>
    %83 = vector.multi_reduction <add>, %82, %cst_77 [1, 2, 3] : vector<1x2x16x16xf32> to vector<1xf32>
    %84 = vector.shape_cast %83 : vector<1xf32> to vector<1x1x1x1xf32>
    %85 = vector.extract %84[0, 0, 0, 0] : f32 from vector<1x1x1x1xf32>
    %86 = vector.broadcast %85 : f32 to vector<1x1xf32>
    %87 = arith.addf %81, %86 : vector<1x1xf32>
    %c0_78 = arith.constant 0 : index
    %c0_79 = arith.constant 0 : index
    %88 = vector.load %arg8[%c0_78, %c0_79] : memref<1x1xf32, #tpu.memory_space<vmem>>, vector<1x1xf32>
    tpu.vector_store %arg8[%c0_78, %c0_79], %87 {strides = array<i32>} : memref<1x1xf32, #tpu.memory_space<vmem>>, vector<1x1xf32>,
    %c0_80 = arith.constant 0 : index
    %c0_81 = arith.constant 0 : index
    %89 = vector.load %arg9[%c0_80, %c0_81] : memref<1x1xf32, #tpu.memory_space<vmem>>, vector<1x1xf32>
    %90 = vector.shape_cast %73 : vector<2x16x16xf32> to vector<1x2x16x16xf32>
    %cst_82 = arith.constant dense<0.000000e+00> : vector<1xf32>
    %91 = vector.multi_reduction <add>, %90, %cst_82 [1, 2, 3] : vector<1x2x16x16xf32> to vector<1xf32>
    %92 = vector.shape_cast %91 : vector<1xf32> to vector<1x1x1x1xf32>
    %93 = vector.extract %92[0, 0, 0, 0] : f32 from vector<1x1x1x1xf32>
    %94 = vector.broadcast %93 : f32 to vector<1x1xf32>
    %95 = arith.addf %89, %94 : vector<1x1xf32>
    %c0_83 = arith.constant 0 : index
    %c0_84 = arith.constant 0 : index
    %96 = vector.load %arg9[%c0_83, %c0_84] : memref<1x1xf32, #tpu.memory_space<vmem>>, vector<1x1xf32>
    tpu.vector_store %arg9[%c0_83, %c0_84], %95 {strides = array<i32>} : memref<1x1xf32, #tpu.memory_space<vmem>>, vector<1x1xf32>,
    return
  }
  func.func @transform_0(%arg0: i32, %arg1: i32) -> (i32, i32, i32) {
    %c0_i32 = arith.constant 0 : i32
    %c0_i32_0 = arith.constant 0 : i32
    return %arg0, %arg1, %c0_i32 : i32, i32, i32
  }
  func.func @transform_1(%arg0: i32, %arg1: i32) -> (i32, i32, i32) {
    %c2_i32 = arith.constant 2 : i32
    %0 = arith.muli %arg1, %c2_i32 : i32
    %c1_i32 = arith.constant 1 : i32
    %1 = arith.subi %0, %c1_i32 : i32
    %c0_i32 = arith.constant 0 : i32
    %2 = arith.maxsi %1, %c0_i32 : i32
    %c0_i32_0 = arith.constant 0 : i32
    %c0_i32_1 = arith.constant 0 : i32
    return %arg0, %2, %c0_i32_0 : i32, i32, i32
  }
  func.func @transform_2(%arg0: i32, %arg1: i32) -> (i32, i32, i32) {
    %c1_i32 = arith.constant 1 : i32
    %0 = arith.addi %arg1, %c1_i32 : i32
    %c2_i32 = arith.constant 2 : i32
    %1 = arith.muli %0, %c2_i32 : i32
    %c1_i32_0 = arith.constant 1 : i32
    %2 = arith.minsi %1, %c1_i32_0 : i32
    %c0_i32 = arith.constant 0 : i32
    %c0_i32_1 = arith.constant 0 : i32
    return %arg0, %2, %c0_i32 : i32, i32, i32
  }
  func.func @transform_3(%arg0: i32, %arg1: i32) -> (i32, i32, i32) {
    %c0_i32 = arith.constant 0 : i32
    %c0_i32_0 = arith.constant 0 : i32
    return %arg0, %arg1, %c0_i32 : i32, i32, i32
  }
  func.func @transform_4(%arg0: i32, %arg1: i32) -> (i32, i32, i32) {
    %c2_i32 = arith.constant 2 : i32
    %0 = arith.muli %arg1, %c2_i32 : i32
    %c1_i32 = arith.constant 1 : i32
    %1 = arith.subi %0, %c1_i32 : i32
    %c0_i32 = arith.constant 0 : i32
    %2 = arith.maxsi %1, %c0_i32 : i32
    %c0_i32_0 = arith.constant 0 : i32
    %c0_i32_1 = arith.constant 0 : i32
    return %arg0, %2, %c0_i32_0 : i32, i32, i32
  }
  func.func @transform_5(%arg0: i32, %arg1: i32) -> (i32, i32, i32) {
    %c1_i32 = arith.constant 1 : i32
    %0 = arith.addi %arg1, %c1_i32 : i32
    %c2_i32 = arith.constant 2 : i32
    %1 = arith.muli %0, %c2_i32 : i32
    %c1_i32_0 = arith.constant 1 : i32
    %2 = arith.minsi %1, %c1_i32_0 : i32
    %c0_i32 = arith.constant 0 : i32
    %c0_i32_1 = arith.constant 0 : i32
    return %arg0, %2, %c0_i32 : i32, i32, i32
  }
  func.func @transform_6(%arg0: i32, %arg1: i32) -> (i32, i32) {
    %c0_i32 = arith.constant 0 : i32
    %c0_i32_0 = arith.constant 0 : i32
    return %arg0, %c0_i32 : i32, i32
  }
  func.func @transform_7(%arg0: i32, %arg1: i32) -> (i32, i32) {
    %c0_i32 = arith.constant 0 : i32
    %c0_i32_0 = arith.constant 0 : i32
    return %arg0, %c0_i32 : i32, i32
  }
}

</mosaic_0001>

<llo_original>
// kernel: tpu_custom_call.1
$region0: #{tpu_custom_call.1}
  #allocation0 [shape = 'u32[]', space=smem, size = 0x4, offset = 0x4, fixed_abs, tag = 'smem constant byte address 0x4 - core index']
  #allocation1 [shape = 'u32[144,128]{1,0:T(1,128)}', space=vmem, size = 0x12000, scoped, tag = 'internal scratch']
  #allocation2 [shape = 'f32[2,18,18]{2,1,0:T(8,128)}', space=vmem, size = 0x6000, scoped, tag = 'scratch operand']
  #allocation3 [shape = 'f32[2,18,18]{2,1,0:T(8,128)}', space=vmem, size = 0x6000, scoped, tag = 'scratch operand']
  %s0 = inlined_call_operand.hbm [shape: f32[2,16,16], index: 0, kind: input, shape index: {}]
  %s1 = inlined_call_operand.hbm [shape: f32[2,16,16], index: 1, kind: input, shape index: {}]
  %s2 = inlined_call_operand.hbm [shape: f32[2,16,16], index: 2, kind: input, shape index: {}]
  %s3 = inlined_call_operand.hbm [shape: f32[2,16,16], index: 3, kind: input, shape index: {}]
  %s4 = inlined_call_operand.hbm [shape: f32[2,16,16], index: 4, kind: input, shape index: {}]
  %s5 = inlined_call_operand.hbm [shape: f32[2,16,16], index: 5, kind: input, shape index: {}]
  %s6 = inlined_call_operand.hbm [shape: f32[1,1], index: 6, kind: output, shape index: {0}]
  %s7 = inlined_call_operand.hbm [shape: f32[1,1], index: 7, kind: output, shape index: {1}]
  %8 = xla_tuple %s6, %s7
  %s9 = sld [smem:[#allocation0]]
  $region70: #{tpu_custom_call.1} parent=0
    _
  %s11 = ssub.s32 1, %s9
  %s12 = scalar_select 0, %s11, %s9
  $region1: #{tpu_custom_call.1} parent=0
    #allocation4 [shape = 'u8[16384]{0}', space=vmem, size = 0x4000, scoped, tag = 'input window, operand 0, single buffered']
    #allocation5 [shape = 's32[1]{0}', space=sflag, size = 0x4, scoped, tag = 'scoped memory for tpu_custom_call.1']
    #allocation6 [shape = 's32[1]{0}', space=sflag, size = 0x4, scoped, tag = 'scoped memory for tpu_custom_call.1']
    #allocation7 [shape = 'u8[8192]{0}', space=vmem, size = 0x2000, scoped, tag = 'input window, operand 1, single buffered']
    #allocation8 [shape = 's32[1]{0}', space=sflag, size = 0x4, scoped, tag = 'scoped memory for tpu_custom_call.1']
    #allocation9 [shape = 'u8[8192]{0}', space=vmem, size = 0x2000, scoped, tag = 'input window, operand 2, single buffered']
    #allocation10 [shape = 'u8[16384]{0}', space=vmem, size = 0x4000, scoped, tag = 'input window, operand 3, single buffered']
    #allocation11 [shape = 's32[1]{0}', space=sflag, size = 0x4, scoped, tag = 'scoped memory for tpu_custom_call.1']
    #allocation12 [shape = 'u8[8192]{0}', space=vmem, size = 0x2000, scoped, tag = 'input window, operand 4, single buffered']
    #allocation13 [shape = 'u8[8192]{0}', space=vmem, size = 0x2000, scoped, tag = 'input window, operand 5, single buffered']
    #allocation14 [shape = 's32[1]{0}', space=sflag, size = 0x4, scoped, tag = 'scoped memory for tpu_custom_call.1']
    #allocation15 [shape = 'u8[512]{0}', space=vmem, size = 0x400, scoped, tag = 'output window, operand 0, single buffered']
    #allocation16 [shape = 'u8[512]{0}', space=vmem, size = 0x400, scoped, tag = 'output window, operand 1, single buffered']
    #allocation17 [shape = 's32[1]{0}', space=sflag, size = 0x4, scoped, tag = 'scoped memory for tpu_custom_call.1']
    %13 = vsyncpa [#allocation5], 0
    %14 = vsyncpa [#allocation8], 0
    %15 = vsyncpa [#allocation11], 0
    %16 = vsyncpa [#allocation14], 0
    %17 = vsyncpa [#allocation6], 0
    %18 = vsyncpa [#allocation17], 0
    // Predicated region
    $region2: #{tpu_custom_call.1} parent=1 // pred_check
      _
    $region3: #{tpu_custom_call.1} parent=1 // pred_check_branch
      %20 = sbr.rel (0) target = $region5
    $region4: #{tpu_custom_call.1} parent=1 // pred_region
      %s22 = ssub.s32 512, 512
      %23 = vsyncadd [#allocation5], %s22
      %s24 = sshll.u32 [#allocation4], 4
      %s25 = int_to_ptr.vmem [resolvable:$true] %s24
      %30 = dma.hbm_to_vmem [thread:$0]  %s0, 512, %s25, [#allocation5], 128, 128, 8
    $region5: #{tpu_custom_call.1} parent=1 // pred_fallthru
      _
    // Predicated region
    $region6: #{tpu_custom_call.1} parent=1 // pred_check
      _
    $region7: #{tpu_custom_call.1} parent=1 // pred_check_branch
      %32 = sbr.rel (0) target = $region9
    $region8: #{tpu_custom_call.1} parent=1 // pred_region
      %s33 = smul.u32 0, 2
      %s34 = ssub.s32 %s33, 1
      %p35 = scmp.gt.s32.totalorder %s34, 0
      %s36 = scalar_select %p35, %s34, 0
      %s38 = ssub.s32 256, 256
      %39 = vsyncadd [#allocation8], %s38
      %s40 = smul.addr %s36, 128
      %s41 = scalar_lea.hbm %s1, %s40
      %s42 = sshll.u32 [#allocation7], 4
      %s43 = int_to_ptr.vmem [resolvable:$true] %s42
      %48 = dma.hbm_to_vmem [thread:$0]  %s41, 256, %s43, [#allocation8], 256, 128, 8
    $region9: #{tpu_custom_call.1} parent=1 // pred_fallthru
      _
    // Predicated region
    $region10: #{tpu_custom_call.1} parent=1 // pred_check
      _
    $region11: #{tpu_custom_call.1} parent=1 // pred_check_branch
      %50 = sbr.rel (0) target = $region13
    $region12: #{tpu_custom_call.1} parent=1 // pred_region
      %s51 = sadd.s32 0, 1
      %s52 = smul.u32 %s51, 2
      %p53 = scmp.lt.s32.totalorder %s52, 1
      %s54 = scalar_select %p53, %s52, 1
      %s56 = ssub.s32 256, 256
      %57 = vsyncadd [#allocation8], %s56
      %s58 = smul.addr %s54, 128
      %s59 = scalar_lea.hbm %s2, %s58
      %s60 = sshll.u32 [#allocation9], 4
      %s61 = int_to_ptr.vmem [resolvable:$true] %s60
      %66 = dma.hbm_to_vmem [thread:$0]  %s59, 256, %s61, [#allocation8], 256, 128, 8
    $region13: #{tpu_custom_call.1} parent=1 // pred_fallthru
      _
    // Predicated region
    $region14: #{tpu_custom_call.1} parent=1 // pred_check
      _
    $region15: #{tpu_custom_call.1} parent=1 // pred_check_branch
      %68 = sbr.rel (0) target = $region17
    $region16: #{tpu_custom_call.1} parent=1 // pred_region
      %s70 = ssub.s32 512, 512
      %71 = vsyncadd [#allocation11], %s70
      %s72 = sshll.u32 [#allocation10], 4
      %s73 = int_to_ptr.vmem [resolvable:$true] %s72
      %78 = dma.hbm_to_vmem [thread:$0]  %s3, 512, %s73, [#allocation11], 128, 128, 8
    $region17: #{tpu_custom_call.1} parent=1 // pred_fallthru
      _
    // Predicated region
    $region18: #{tpu_custom_call.1} parent=1 // pred_check
      _
    $region19: #{tpu_custom_call.1} parent=1 // pred_check_branch
      %80 = sbr.rel (0) target = $region21
    $region20: #{tpu_custom_call.1} parent=1 // pred_region
      %s81 = smul.u32 0, 2
      %s82 = ssub.s32 %s81, 1
      %p83 = scmp.gt.s32.totalorder %s82, 0
      %s84 = scalar_select %p83, %s82, 0
      %s86 = ssub.s32 256, 256
      %87 = vsyncadd [#allocation11], %s86
      %s88 = smul.addr %s84, 128
      %s89 = scalar_lea.hbm %s4, %s88
      %s90 = sshll.u32 [#allocation12], 4
      %s91 = int_to_ptr.vmem [resolvable:$true] %s90
      %96 = dma.hbm_to_vmem [thread:$0]  %s89, 256, %s91, [#allocation11], 256, 128, 8
    $region21: #{tpu_custom_call.1} parent=1 // pred_fallthru
      _
    // Predicated region
    $region22: #{tpu_custom_call.1} parent=1 // pred_check
      _
    $region23: #{tpu_custom_call.1} parent=1 // pred_check_branch
      %98 = sbr.rel (0) target = $region25
    $region24: #{tpu_custom_call.1} parent=1 // pred_region
      %s99 = sadd.s32 0, 1
      %s100 = smul.u32 %s99, 2
      %p101 = scmp.lt.s32.totalorder %s100, 1
      %s102 = scalar_select %p101, %s100, 1
      %s104 = ssub.s32 256, 256
      %105 = vsyncadd [#allocation14], %s104
      %s106 = smul.addr %s102, 128
      %s107 = scalar_lea.hbm %s5, %s106
      %s108 = sshll.u32 [#allocation13], 4
      %s109 = int_to_ptr.vmem [resolvable:$true] %s108
      %114 = dma.hbm_to_vmem [thread:$0]  %s107, 256, %s109, [#allocation14], 256, 128, 8
    $region25: #{tpu_custom_call.1} parent=1 // pred_fallthru
      _
    // Predicated region
    $region26: #{tpu_custom_call.1} parent=1 // pred_check
      _
    $region27: #{tpu_custom_call.1} parent=1 // pred_check_branch
      %116 = sbr.rel (0) target = $region29
    $region28: #{tpu_custom_call.1} parent=1 // pred_region
      %117 = dma.done [#allocation5], 512
    $region29: #{tpu_custom_call.1} parent=1 // pred_fallthru
      _
    // Predicated region
    $region30: #{tpu_custom_call.1} parent=1 // pred_check
      _
    $region31: #{tpu_custom_call.1} parent=1 // pred_check_branch
      %119 = sbr.rel (0) target = $region33
    $region32: #{tpu_custom_call.1} parent=1 // pred_region
      %120 = dma.done [#allocation8], 256
    $region33: #{tpu_custom_call.1} parent=1 // pred_fallthru
      _
    // Predicated region
    $region34: #{tpu_custom_call.1} parent=1 // pred_check
      _
    $region35: #{tpu_custom_call.1} parent=1 // pred_check_branch
      %122 = sbr.rel (0) target = $region37
    $region36: #{tpu_custom_call.1} parent=1 // pred_region
      %123 = dma.done [#allocation8], 256
    $region37: #{tpu_custom_call.1} parent=1 // pred_fallthru
      _
    // Predicated region
    $region38: #{tpu_custom_call.1} parent=1 // pred_check
      _
    $region39: #{tpu_custom_call.1} parent=1 // pred_check_branch
      %125 = sbr.rel (0) target = $region41
    $region40: #{tpu_custom_call.1} parent=1 // pred_region
      %126 = dma.done [#allocation11], 512
    $region41: #{tpu_custom_call.1} parent=1 // pred_fallthru
      _
    // Predicated region
    $region42: #{tpu_custom_call.1} parent=1 // pred_check
      _
    $region43: #{tpu_custom_call.1} parent=1 // pred_check_branch
      %128 = sbr.rel (0) target = $region45
    $region44: #{tpu_custom_call.1} parent=1 // pred_region
      %129 = dma.done [#allocation11], 256
    $region45: #{tpu_custom_call.1} parent=1 // pred_fallthru
      _
    // Predicated region
    $region46: #{tpu_custom_call.1} parent=1 // pred_check
      _
    $region47: #{tpu_custom_call.1} parent=1 // pred_check_branch
      %131 = sbr.rel (0) target = $region49
    $region48: #{tpu_custom_call.1} parent=1 // pred_region
      %132 = dma.done [#allocation14], 256
    $region49: #{tpu_custom_call.1} parent=1 // pred_fallthru
      _
    %s133 = smul.u32 0, 2
    %s134 = ssub.s32 %s133, 1
    %p135 = scmp.gt.s32.totalorder %s134, 0
    %s136 = scalar_select %p135, %s134, 0
    %s137 = sadd.s32 0, 1
    %s138 = smul.u32 %s137, 2
    %p139 = scmp.lt.s32.totalorder %s138, 1
    %s140 = scalar_select %p139, %s138, 1
    %s141 = smul.u32 0, 2
    %s142 = ssub.s32 %s141, 1
    %p143 = scmp.gt.s32.totalorder %s142, 0
    %s144 = scalar_select %p143, %s142, 0
    %s145 = sadd.s32 0, 1
    %s146 = smul.u32 %s145, 2
    %p147 = scmp.lt.s32.totalorder %s146, 1
    %s148 = scalar_select %p147, %s146, 1
    %s149 = smul.u32 0, 16
    %p150 = scmp.eq.s32.totalorder 0, 0
    // Predicated region
    $region50: #{tpu_custom_call.1} parent=1 // pred_check
      %p151 = pneg %p150
    $region51: #{tpu_custom_call.1} parent=1 // pred_check_branch
      %153 = sbr.rel (%p151) target = $region53
    $region52: #{tpu_custom_call.1} parent=1 // pred_region
      %vm154 = vcmask 0
      %155 = vst.msk [vmem:[#allocation15] sm:$0x1] %vm154, 0.0
      %156 = vst.msk [vmem:[#allocation16] sm:$0x1] %vm154, 0.0
    $region53: #{tpu_custom_call.1} parent=1 // pred_fallthru
      _
    %v157 = vld [vmem:[#allocation4] sm:$0xff]
    %v158 = vld [vmem:[#allocation4 + $0x8] sm:$0xff]
    %v159 = vld [vmem:[#allocation4 + $0x10] sm:$0xff]
    %v160 = vld [vmem:[#allocation4 + $0x18] sm:$0xff]
    %p161 = scmp.gt.s32.totalorder 0, 0
    %v162 = vld [vmem:[#allocation7 + $0x7] sm:$0x1]
    %v163 = vld [vmem:[#allocation7 + $0xf] sm:$0x1]
    %s164 = scalar_select %p161, 1, 0
    %v165 = vstv %s164
    %vm166 = vcmp.eq.s32.totalorder %v165, 1
    %v167 = vsel %vm166, %v162, 0.0
    %v168 = vsel %vm166, %v163, 0.0
    %s169 = sadd.s32 %s149, 16
    %p170 = scmp.lt.s32.totalorder %s169, 16
    %v171 = vld [vmem:[#allocation9] sm:$0x1]
    %v172 = vld [vmem:[#allocation9 + $0x8] sm:$0x1]
    %s173 = scalar_select %p170, 1, 0
    %v174 = vstv %s173
    %vm175 = vcmp.eq.s32.totalorder %v174, 1
    %v176 = vsel %vm175, %v171, 0.0
    %v177 = vsel %vm175, %v172, 0.0
    %vm178 = vcmask 7168
    %179 = vst.msk [vmem:[#allocation2] sm:$0xff] %vm178, 0.0
    %180 = vst.msk [vmem:[#allocation2 + $0x8] sm:$0xff] %vm178, 0.0
    %vm181 = vcmask 1024
    %182 = vst.msk [vmem:[#allocation2 + $0x10] sm:$0x3] %vm181, 0.0
    %183 = vst.msk [vmem:[#allocation2 + $0x18] sm:$0xff] %vm178, 0.0
    %184 = vst.msk [vmem:[#allocation2 + $0x20] sm:$0xff] %vm178, 0.0
    %185 = vst.msk [vmem:[#allocation2 + $0x28] sm:$0x3] %vm181, 0.0
    %vm186 = vcmask 146568
    %187 = vst.msk [vmem:[#allocation2] sm:$0xff] %vm186, 0.0
    %188 = vst.msk [vmem:[#allocation2 + $0x8] sm:$0xff] %vm186, 0.0
    %vm189 = vcmask 140424
    %190 = vst.msk [vmem:[#allocation2 + $0x10] sm:$0x3] %vm189, 0.0
    %191 = vst.msk [vmem:[#allocation2 + $0x18] sm:$0xff] %vm186, 0.0
    %192 = vst.msk [vmem:[#allocation2 + $0x20] sm:$0xff] %vm186, 0.0
    %193 = vst.msk [vmem:[#allocation2 + $0x28] sm:$0x3] %vm189, 0.0
    %196 = vrot.lane.b32.xlu0 %v167, 1
    %v197 = vpop.permute.xlu0 %196
    %198 = vrot.lane.b32.xlu0 %v168, 1
    %v199 = vpop.permute.xlu0 %198
    %vm202 = vcmask 131080
    %203 = vst.msk [vmem:[#allocation2] sm:$0x1] %vm202, %v197
    %204 = vst.msk [vmem:[#allocation2 + $0x18] sm:$0x1] %vm202, %v199
    %207 = vrot.lane.b32.xlu0 %v176, 1
    %v208 = vpop.permute.xlu0 %207
    %209 = vrot.lane.b32.xlu0 %v177, 1
    %v210 = vpop.permute.xlu0 %209
    %213 = vst.msk [vmem:[#allocation2 + $0x11] sm:$0x1] %vm202, %v208
    %214 = vst.msk [vmem:[#allocation2 + $0x29] sm:$0x1] %vm202, %v210
    %219 = vrot.lane.b32.xlu0 %v157, 1
    %v220 = vpop.permute.xlu0 %219
    %221 = vrot.lane.b32.xlu0 %v158, 1
    %v222 = vpop.permute.xlu0 %221
    %223 = vrot.lane.b32.xlu0 %v159, 1
    %v224 = vpop.permute.xlu0 %223
    %225 = vrot.lane.b32.xlu0 %v160, 1
    %v226 = vpop.permute.xlu0 %225
    %vm231 = vcmask 138248
    %232 = vst.msk [vmem:[#allocation2 + $0x1] sm:$0xff] %vm231, %v220
    %233 = vst.msk [vmem:[#allocation2 + $0x9] sm:$0xff] %vm231, %v222
    %234 = vst.msk [vmem:[#allocation2 + $0x19] sm:$0xff] %vm231, %v224
    %235 = vst.msk [vmem:[#allocation2 + $0x21] sm:$0xff] %vm231, %v226
    %v236 = vld [vmem:[#allocation2] sm:$0xff]
    %v237 = vld [vmem:[#allocation2 + $0x8] sm:$0xff]
    %v238 = vld [vmem:[#allocation2 + $0x10] sm:$0x3]
    %v239 = vld [vmem:[#allocation2 + $0x18] sm:$0xff]
    %v240 = vld [vmem:[#allocation2 + $0x20] sm:$0xff]
    %v241 = vld [vmem:[#allocation2 + $0x28] sm:$0x3]
    %248 = vrot.lane.b32.xlu0 %v236, 126
    %v249 = vpop.permute.xlu0 %248
    %250 = vrot.lane.b32.xlu0 %v237, 126
    %v251 = vpop.permute.xlu0 %250
    %252 = vrot.lane.b32.xlu0 %v238, 126
    %v253 = vpop.permute.xlu0 %252
    %254 = vrot.lane.b32.xlu0 %v239, 126
    %v255 = vpop.permute.xlu0 %254
    %256 = vrot.lane.b32.xlu0 %v240, 126
    %v257 = vpop.permute.xlu0 %256
    %258 = vrot.lane.b32.xlu0 %v241, 126
    %v259 = vpop.permute.xlu0 %258
    %v266 = vsub.f32 %v236, %v249
    %v267 = vsub.f32 %v237, %v251
    %v268 = vsub.f32 %v238, %v253
    %v269 = vsub.f32 %v239, %v255
    %v270 = vsub.f32 %v240, %v257
    %v271 = vsub.f32 %v241, %v259
    %v272 = vadd.f32 %v236, %v249
    %v273 = vadd.f32 %v237, %v251
    %v274 = vadd.f32 %v238, %v253
    %v275 = vadd.f32 %v239, %v255
    %v276 = vadd.f32 %v240, %v257
    %v277 = vadd.f32 %v241, %v259
    %v278 = vadd.f32 %v236, %v236
    %v279 = vadd.f32 %v237, %v237
    %v280 = vadd.f32 %v238, %v238
    %v281 = vadd.f32 %v239, %v239
    %v282 = vadd.f32 %v240, %v240
    %v283 = vadd.f32 %v241, %v241
    %290 = vrot.lane.b32.xlu0 %v278, 127
    %v291 = vpop.permute.xlu0 %290
    %292 = vrot.lane.b32.xlu0 %v279, 127
    %v293 = vpop.permute.xlu0 %292
    %294 = vrot.lane.b32.xlu0 %v280, 127
    %v295 = vpop.permute.xlu0 %294
    %296 = vrot.lane.b32.xlu0 %v281, 127
    %v297 = vpop.permute.xlu0 %296
    %298 = vrot.lane.b32.xlu0 %v282, 127
    %v299 = vpop.permute.xlu0 %298
    %300 = vrot.lane.b32.xlu0 %v283, 127
    %v301 = vpop.permute.xlu0 %300
    %v308 = vadd.f32 %v272, %v291
    %v309 = vadd.f32 %v273, %v293
    %v310 = vadd.f32 %v274, %v295
    %v311 = vadd.f32 %v275, %v297
    %v312 = vadd.f32 %v276, %v299
    %v313 = vadd.f32 %v277, %v301
    %v314 = vadd.f32 %v266, %v266
    %v315 = vadd.f32 %v267, %v267
    %v316 = vadd.f32 %v268, %v268
    %v317 = vadd.f32 %v269, %v269
    %v318 = vadd.f32 %v270, %v270
    %v319 = vadd.f32 %v271, %v271
    %vm326 = vcmask 1046528
    %v327 = vrot.slane %v314, 1
    %v328 = vrot.slane %v315, 1
    %v329 = vsel %vm326, %v327, %v328
    %v330 = vrot.slane %v316, 1
    %v331 = vsel %vm326, %v328, %v330
    %v332 = vrot.slane %v317, 1
    %v333 = vrot.slane %v318, 1
    %v334 = vsel %vm326, %v332, %v333
    %v335 = vrot.slane %v319, 1
    %v336 = vsel %vm326, %v333, %v335
    %v341 = vadd.f32 %v266, %v329
    %v342 = vadd.f32 %v267, %v331
    %v343 = vadd.f32 %v269, %v334
    %v344 = vadd.f32 %v270, %v336
    %vm351 = vcmask 1045504
    %v352 = vrot.slane %v266, 2
    %v353 = vrot.slane %v267, 2
    %v354 = vsel %vm351, %v352, %v353
    %v355 = vrot.slane %v268, 2
    %v356 = vsel %vm351, %v353, %v355
    %v357 = vrot.slane %v269, 2
    %v358 = vrot.slane %v270, 2
    %v359 = vsel %vm351, %v357, %v358
    %v360 = vrot.slane %v271, 2
    %v361 = vsel %vm351, %v358, %v360
    %v366 = vadd.f32 %v341, %v354
    %v367 = vadd.f32 %v342, %v356
    %v368 = vadd.f32 %v343, %v359
    %v369 = vadd.f32 %v344, %v361
    %v376 = vrot.slane %v308, 2
    %v377 = vrot.slane %v309, 2
    %v378 = vsel %vm351, %v376, %v377
    %v379 = vrot.slane %v310, 2
    %v380 = vsel %vm351, %v377, %v379
    %v381 = vrot.slane %v311, 2
    %v382 = vrot.slane %v312, 2
    %v383 = vsel %vm351, %v381, %v382
    %v384 = vrot.slane %v313, 2
    %v385 = vsel %vm351, %v382, %v384
    %v390 = vsub.f32 %v308, %v378
    %v391 = vsub.f32 %v309, %v380
    %v392 = vsub.f32 %v311, %v383
    %v393 = vsub.f32 %v312, %v385
    %v394 = vld [vmem:[#allocation10] sm:$0xff]
    %v395 = vld [vmem:[#allocation10 + $0x8] sm:$0xff]
    %v396 = vld [vmem:[#allocation10 + $0x10] sm:$0xff]
    %v397 = vld [vmem:[#allocation10 + $0x18] sm:$0xff]
    %v398 = vld [vmem:[#allocation12 + $0x7] sm:$0x1]
    %v399 = vld [vmem:[#allocation12 + $0xf] sm:$0x1]
    %v400 = vsel %vm166, %v398, 0.0
    %v401 = vsel %vm166, %v399, 0.0
    %v402 = vld [vmem:[#allocation13] sm:$0x1]
    %v403 = vld [vmem:[#allocation13 + $0x8] sm:$0x1]
    %v404 = vsel %vm175, %v402, 0.0
    %v405 = vsel %vm175, %v403, 0.0
    %406 = vst.msk [vmem:[#allocation3] sm:$0xff] %vm178, 0.0
    %407 = vst.msk [vmem:[#allocation3 + $0x8] sm:$0xff] %vm178, 0.0
    %408 = vst.msk [vmem:[#allocation3 + $0x10] sm:$0x3] %vm181, 0.0
    %409 = vst.msk [vmem:[#allocation3 + $0x18] sm:$0xff] %vm178, 0.0
    %410 = vst.msk [vmem:[#allocation3 + $0x20] sm:$0xff] %vm178, 0.0
    %411 = vst.msk [vmem:[#allocation3 + $0x28] sm:$0x3] %vm181, 0.0
    %412 = vst.msk [vmem:[#allocation3] sm:$0xff] %vm186, 0.0
    %413 = vst.msk [vmem:[#allocation3 + $0x8] sm:$0xff] %vm186, 0.0
    %414 = vst.msk [vmem:[#allocation3 + $0x10] sm:$0x3] %vm189, 0.0
    %415 = vst.msk [vmem:[#allocation3 + $0x18] sm:$0xff] %vm186, 0.0
    %416 = vst.msk [vmem:[#allocation3 + $0x20] sm:$0xff] %vm186, 0.0
    %417 = vst.msk [vmem:[#allocation3 + $0x28] sm:$0x3] %vm189, 0.0
    %420 = vrot.lane.b32.xlu0 %v400, 1
    %v421 = vpop.permute.xlu0 %420
    %422 = vrot.lane.b32.xlu0 %v401, 1
    %v423 = vpop.permute.xlu0 %422
    %426 = vst.msk [vmem:[#allocation3] sm:$0x1] %vm202, %v421
    %427 = vst.msk [vmem:[#allocation3 + $0x18] sm:$0x1] %vm202, %v423
    %430 = vrot.lane.b32.xlu0 %v404, 1
    %v431 = vpop.permute.xlu0 %430
    %432 = vrot.lane.b32.xlu0 %v405, 1
    %v433 = vpop.permute.xlu0 %432
    %436 = vst.msk [vmem:[#allocation3 + $0x11] sm:$0x1] %vm202, %v431
    %437 = vst.msk [vmem:[#allocation3 + $0x29] sm:$0x1] %vm202, %v433
    %442 = vrot.lane.b32.xlu0 %v394, 1
    %v443 = vpop.permute.xlu0 %442
    %444 = vrot.lane.b32.xlu0 %v395, 1
    %v445 = vpop.permute.xlu0 %444
    %446 = vrot.lane.b32.xlu0 %v396, 1
    %v447 = vpop.permute.xlu0 %446
    %448 = vrot.lane.b32.xlu0 %v397, 1
    %v449 = vpop.permute.xlu0 %448
    %454 = vst.msk [vmem:[#allocation3 + $0x1] sm:$0xff] %vm231, %v443
    %455 = vst.msk [vmem:[#allocation3 + $0x9] sm:$0xff] %vm231, %v445
    %456 = vst.msk [vmem:[#allocation3 + $0x19] sm:$0xff] %vm231, %v447
    %457 = vst.msk [vmem:[#allocation3 + $0x21] sm:$0xff] %vm231, %v449
    %v458 = vld [vmem:[#allocation3] sm:$0xff]
    %v459 = vld [vmem:[#allocation3 + $0x8] sm:$0xff]
    %v460 = vld [vmem:[#allocation3 + $0x10] sm:$0x3]
    %v461 = vld [vmem:[#allocation3 + $0x18] sm:$0xff]
    %v462 = vld [vmem:[#allocation3 + $0x20] sm:$0xff]
    %v463 = vld [vmem:[#allocation3 + $0x28] sm:$0x3]
    %470 = vrot.lane.b32.xlu0 %v458, 126
    %v471 = vpop.permute.xlu0 %470
    %472 = vrot.lane.b32.xlu0 %v459, 126
    %v473 = vpop.permute.xlu0 %472
    %474 = vrot.lane.b32.xlu0 %v460, 126
    %v475 = vpop.permute.xlu0 %474
    %476 = vrot.lane.b32.xlu0 %v461, 126
    %v477 = vpop.permute.xlu0 %476
    %478 = vrot.lane.b32.xlu0 %v462, 126
    %v479 = vpop.permute.xlu0 %478
    %480 = vrot.lane.b32.xlu0 %v463, 126
    %v481 = vpop.permute.xlu0 %480
    %v488 = vsub.f32 %v458, %v471
    %v489 = vsub.f32 %v459, %v473
    %v490 = vsub.f32 %v460, %v475
    %v491 = vsub.f32 %v461, %v477
    %v492 = vsub.f32 %v462, %v479
    %v493 = vsub.f32 %v463, %v481
    %v494 = vadd.f32 %v458, %v471
    %v495 = vadd.f32 %v459, %v473
    %v496 = vadd.f32 %v460, %v475
    %v497 = vadd.f32 %v461, %v477
    %v498 = vadd.f32 %v462, %v479
    %v499 = vadd.f32 %v463, %v481
    %v500 = vadd.f32 %v458, %v458
    %v501 = vadd.f32 %v459, %v459
    %v502 = vadd.f32 %v460, %v460
    %v503 = vadd.f32 %v461, %v461
    %v504 = vadd.f32 %v462, %v462
    %v505 = vadd.f32 %v463, %v463
    %512 = vrot.lane.b32.xlu0 %v500, 127
    %v513 = vpop.permute.xlu0 %512
    %514 = vrot.lane.b32.xlu0 %v501, 127
    %v515 = vpop.permute.xlu0 %514
    %516 = vrot.lane.b32.xlu0 %v502, 127
    %v517 = vpop.permute.xlu0 %516
    %518 = vrot.lane.b32.xlu0 %v503, 127
    %v519 = vpop.permute.xlu0 %518
    %520 = vrot.lane.b32.xlu0 %v504, 127
    %v521 = vpop.permute.xlu0 %520
    %522 = vrot.lane.b32.xlu0 %v505, 127
    %v523 = vpop.permute.xlu0 %522
    %v530 = vadd.f32 %v494, %v513
    %v531 = vadd.f32 %v495, %v515
    %v532 = vadd.f32 %v496, %v517
    %v533 = vadd.f32 %v497, %v519
    %v534 = vadd.f32 %v498, %v521
    %v535 = vadd.f32 %v499, %v523
    %v536 = vadd.f32 %v488, %v488
    %v537 = vadd.f32 %v489, %v489
    %v538 = vadd.f32 %v490, %v490
    %v539 = vadd.f32 %v491, %v491
    %v540 = vadd.f32 %v492, %v492
    %v541 = vadd.f32 %v493, %v493
    %v548 = vrot.slane %v536, 1
    %v549 = vrot.slane %v537, 1
    %v550 = vsel %vm326, %v548, %v549
    %v551 = vrot.slane %v538, 1
    %v552 = vsel %vm326, %v549, %v551
    %v553 = vrot.slane %v539, 1
    %v554 = vrot.slane %v540, 1
    %v555 = vsel %vm326, %v553, %v554
    %v556 = vrot.slane %v541, 1
    %v557 = vsel %vm326, %v554, %v556
    %v562 = vadd.f32 %v488, %v550
    %v563 = vadd.f32 %v489, %v552
    %v564 = vadd.f32 %v491, %v555
    %v565 = vadd.f32 %v492, %v557
    %v572 = vrot.slane %v488, 2
    %v573 = vrot.slane %v489, 2
    %v574 = vsel %vm351, %v572, %v573
    %v575 = vrot.slane %v490, 2
    %v576 = vsel %vm351, %v573, %v575
    %v577 = vrot.slane %v491, 2
    %v578 = vrot.slane %v492, 2
    %v579 = vsel %vm351, %v577, %v578
    %v580 = vrot.slane %v493, 2
    %v581 = vsel %vm351, %v578, %v580
    %v586 = vadd.f32 %v562, %v574
    %v587 = vadd.f32 %v563, %v576
    %v588 = vadd.f32 %v564, %v579
    %v589 = vadd.f32 %v565, %v581
    %v596 = vrot.slane %v530, 2
    %v597 = vrot.slane %v531, 2
    %v598 = vsel %vm351, %v596, %v597
    %v599 = vrot.slane %v532, 2
    %v600 = vsel %vm351, %v597, %v599
    %v601 = vrot.slane %v533, 2
    %v602 = vrot.slane %v534, 2
    %v603 = vsel %vm351, %v601, %v602
    %v604 = vrot.slane %v535, 2
    %v605 = vsel %vm351, %v602, %v604
    %v610 = vsub.f32 %v530, %v598
    %v611 = vsub.f32 %v531, %v600
    %v612 = vsub.f32 %v533, %v603
    %v613 = vsub.f32 %v534, %v605
    %v614 = vmul.f32 %v586, %v586
    %v615 = vmul.f32 %v587, %v587
    %v616 = vmul.f32 %v588, %v588
    %v617 = vmul.f32 %v589, %v589
    %v618 = vmul.f32 %v610, %v610
    %v619 = vmul.f32 %v611, %v611
    %v620 = vmul.f32 %v612, %v612
    %v621 = vmul.f32 %v613, %v613
    %v622 = vadd.f32 %v614, %v618
    %v623 = vadd.f32 %v615, %v619
    %v624 = vadd.f32 %v616, %v620
    %v625 = vadd.f32 %v617, %v621
    %v626 = vadd.f32 %v622, 1e-06
    %v627 = vadd.f32 %v623, 1e-06
    %v628 = vadd.f32 %v624, 1e-06
    %v629 = vadd.f32 %v625, 1e-06
    %v630 = vrsqrt.pop %v626
    %v631 = vmul.f32 %v626, %v630
    %vm632 = vcmp.eq.f32.partialorder %v626, inf
    %v633 = vsel %vm632, %v626, %v631
    %vm634 = vcmp.eq.f32.partialorder %v626, 0.0
    %v635 = vand.u32 %v626, 2147483648
    %v636 = vsel %vm634, %v635, %v633
    %v637 = vrsqrt.pop %v627
    %v638 = vmul.f32 %v627, %v637
    %vm639 = vcmp.eq.f32.partialorder %v627, inf
    %v640 = vsel %vm639, %v627, %v638
    %vm641 = vcmp.eq.f32.partialorder %v627, 0.0
    %v642 = vand.u32 %v627, 2147483648
    %v643 = vsel %vm641, %v642, %v640
    %v644 = vrsqrt.pop %v628
    %v645 = vmul.f32 %v628, %v644
    %vm646 = vcmp.eq.f32.partialorder %v628, inf
    %v647 = vsel %vm646, %v628, %v645
    %vm648 = vcmp.eq.f32.partialorder %v628, 0.0
    %v649 = vand.u32 %v628, 2147483648
    %v650 = vsel %vm648, %v649, %v647
    %v651 = vrsqrt.pop %v629
    %v652 = vmul.f32 %v629, %v651
    %vm653 = vcmp.eq.f32.partialorder %v629, inf
    %v654 = vsel %vm653, %v629, %v652
    %vm655 = vcmp.eq.f32.partialorder %v629, 0.0
    %v656 = vand.u32 %v629, 2147483648
    %v657 = vsel %vm655, %v656, %v654
    %v658 = vmul.f32 %v366, %v586
    %v659 = vmul.f32 %v367, %v587
    %v660 = vmul.f32 %v368, %v588
    %v661 = vmul.f32 %v369, %v589
    %v662 = vmul.f32 %v390, %v610
    %v663 = vmul.f32 %v391, %v611
    %v664 = vmul.f32 %v392, %v612
    %v665 = vmul.f32 %v393, %v613
    %v666 = vadd.f32 %v658, %v662
    %v667 = vadd.f32 %v659, %v663
    %v668 = vadd.f32 %v660, %v664
    %v669 = vadd.f32 %v661, %v665
    %v670 = vmul.f32 %v666, %v666
    %v671 = vmul.f32 %v667, %v667
    %v672 = vmul.f32 %v668, %v668
    %v673 = vmul.f32 %v669, %v669
    %v674 = vsub.f32 1.0, %v670
    %v675 = vsub.f32 1.0, %v671
    %v676 = vsub.f32 1.0, %v672
    %v677 = vsub.f32 1.0, %v673
    %v678 = vmul.f32 %v636, %v674
    %v679 = vmul.f32 %v643, %v675
    %v680 = vmul.f32 %v650, %v676
    %v681 = vmul.f32 %v657, %v677
    %v682 = vld [vmem:[#allocation15] sm:$0x1]
    %vm683 = vcmask 130048
    %v684 = vsel %vm683, %v678, 0.0
    %v685 = vsel %vm683, %v679, 0.0
    %v686 = vadd.f32 %v684, %v685
    %v687 = vsel %vm683, %v680, 0.0
    %v688 = vadd.f32 %v686, %v687
    %v689 = vsel %vm683, %v681, 0.0
    %v690 = vadd.f32 %v688, %v689
    %691 = vadd.xlane.f32.xlu0 %v690
    %v692 = vpop.xlane.xlu0 %691
    %v693 = vrot.slane %v692, 4
    %v694 = vadd.f32 %v692, %v693
    %v695 = vrot.slane %v694, 2
    %v696 = vadd.f32 %v694, %v695
    %v697 = vrot.slane %v696, 1
    %v698 = vadd.f32 %v696, %v697
    %s699 = vtos %v698
    %v700 = vstv %s699
    %v701 = vadd.f32 %v682, %v700
    %vm702 = vcmask 0
    %703 = vst.msk [vmem:[#allocation15] sm:$0x1] %vm702, %v701
    %v704 = vld [vmem:[#allocation16] sm:$0x1]
    %v705 = vsel %vm683, %v636, 0.0
    %v706 = vsel %vm683, %v643, 0.0
    %v707 = vadd.f32 %v705, %v706
    %v708 = vsel %vm683, %v650, 0.0
    %v709 = vadd.f32 %v707, %v708
    %v710 = vsel %vm683, %v657, 0.0
    %v711 = vadd.f32 %v709, %v710
    %712 = vadd.xlane.f32.xlu0 %v711
    %v713 = vpop.xlane.xlu0 %712
    %v714 = vrot.slane %v713, 4
    %v715 = vadd.f32 %v713, %v714
    %v716 = vrot.slane %v715, 2
    %v717 = vadd.f32 %v715, %v716
    %v718 = vrot.slane %v717, 1
    %v719 = vadd.f32 %v717, %v718
    %s720 = vtos %v719
    %v721 = vstv %s720
    %v722 = vadd.f32 %v704, %v721
    %723 = vst.msk [vmem:[#allocation16] sm:$0x1] %vm702, %v722
    // Predicated region
    $region54: #{tpu_custom_call.1} parent=1 // pred_check
      _
    $region55: #{tpu_custom_call.1} parent=1 // pred_check_branch
      %725 = sbr.rel (0) target = $region57
    $region56: #{tpu_custom_call.1} parent=1 // pred_region
      %s727 = ssub.s32 16, 16
      %728 = vsyncadd [#allocation6], %s727
      %s730 = sshll.u32 [#allocation15], 4
      %s731 = int_to_ptr.vmem [resolvable:$true] %s730
      %733 = dma.vmem_to_hbm [thread:$0]  %s731, 16, %s6, [#allocation6]
    $region57: #{tpu_custom_call.1} parent=1 // pred_fallthru
      _
    // Predicated region
    $region58: #{tpu_custom_call.1} parent=1 // pred_check
      _
    $region59: #{tpu_custom_call.1} parent=1 // pred_check_branch
      %735 = sbr.rel (0) target = $region61
    $region60: #{tpu_custom_call.1} parent=1 // pred_region
      %s737 = ssub.s32 16, 16
      %738 = vsyncadd [#allocation17], %s737
      %s740 = sshll.u32 [#allocation16], 4
      %s741 = int_to_ptr.vmem [resolvable:$true] %s740
      %743 = dma.vmem_to_hbm [thread:$0]  %s741, 16, %s7, [#allocation17]
    $region61: #{tpu_custom_call.1} parent=1 // pred_fallthru
      _
    // Predicated region
    $region62: #{tpu_custom_call.1} parent=1 // pred_check
      _
    $region63: #{tpu_custom_call.1} parent=1 // pred_check_branch
      %745 = sbr.rel (0) target = $region65
    $region64: #{tpu_custom_call.1} parent=1 // pred_region
      %746 = dma.done [#allocation6], 16
    $region65: #{tpu_custom_call.1} parent=1 // pred_fallthru
      _
    // Predicated region
    $region66: #{tpu_custom_call.1} parent=1 // pred_check
      _
    $region67: #{tpu_custom_call.1} parent=1 // pred_check_branch
      %748 = sbr.rel (0) target = $region69
    $region68: #{tpu_custom_call.1} parent=1 // pred_region
      %749 = dma.done [#allocation17], 16
    $region69: #{tpu_custom_call.1} parent=1 // pred_fallthru
      _
    %750 = vsyncpa [#allocation5], 1
    %751 = vsyncpa [#allocation8], 1
    %752 = vsyncpa [#allocation11], 1
    %753 = vsyncpa [#allocation14], 1
    %754 = vsyncpa [#allocation6], 1
    %755 = vsyncpa [#allocation17], 1

</llo_original>
